<compile_context>
chip_gen: v7x
topology: tpu7x:2x2x1
jax: 0.10.0
libtpu: 0.0.40
codegen_flags: <defaults>
</compile_context>

<pallas_src>
import functools
import math

import jax
import jax.numpy as jnp
from jax.experimental import pallas as pl
from jax.experimental.pallas import tpu as pltpu

ALPHA = 0.25
GAMMA = 2.0
SMOOTH = 1e-6

# Lane-dense slab widths, tried widest first (all multiples of 128).
_WIDTHS = (1024, 512, 256, 128)
# ~512K elements (2 MiB f32) per block buffer; 3 arrays x 2 pipeline buffers
# = 12 MiB total -> safe on v5e/v6e/v7x.
_BLOCK_ELEMS = 512 * 1024
_VMEM_LIMIT = 32 * 1024 * 1024


def _focal_kernel(out_ref, tgt_ref, loss_ref, *, alpha, gamma, smooth):
    x = out_ref[...].astype(jnp.float32)
    t = tgt_ref[...].astype(jnp.float32)

    # One shared exp for sigmoid and both log-sigmoids (EUP: exp, recip, log).
    e = jnp.exp(-jnp.abs(x))                   # in (0, 1], never overflows
    inv = 1.0 / (1.0 + e)
    prob = jnp.where(x >= 0.0, inv, e * inv)   # == sigmoid(x)
    prob = jnp.clip(prob, smooth, 1.0 - smooth)

    # log(sigmoid(x))   = min(x, 0) - log(1 + exp(-|x|))
    # log(1-sigmoid(x)) = -max(x, 0) - log(1 + exp(-|x|))
    # Clamping at log(smooth)/log(1-smooth) reproduces log(clipped prob).
    lse = jnp.log(1.0 + e)
    log_lo = math.log(smooth)
    log_hi = math.log1p(-smooth)
    log_p = jnp.clip(jnp.minimum(x, 0.0) - lse, log_lo, log_hi)
    log_1mp = jnp.clip(-jnp.maximum(x, 0.0) - lse, log_lo, log_hi)

    one_m_prob = 1.0 - prob
    if gamma == 2.0:
        # VPU squares instead of power() -> exp(gamma*log(.)) on the EUP.
        pow_1mp = one_m_prob * one_m_prob
        pow_p = prob * prob
    else:
        pow_1mp = jnp.power(one_m_prob, gamma)
        pow_p = jnp.power(prob, gamma)

    loss = (-t * (1.0 - alpha) * pow_1mp * log_p
            - (1.0 - t) * alpha * pow_p * log_1mp)
    loss_ref[...] = loss.astype(loss_ref.dtype)


def binary_focal_loss(output, target, alpha=ALPHA, gamma=GAMMA, smooth=SMOOTH):
    assert output.shape == target.shape, "output/target must have same shape"
    orig_shape = output.shape
    orig_dtype = output.dtype
    n = int(output.size)

    out_flat = jnp.ravel(output)   # contiguous reshape: no HBM copy
    tgt_flat = jnp.ravel(target)

    # Pick the widest lane-dense width that divides n -> no pad copy needed.
    width = next((w for w in _WIDTHS if n % w == 0), None)
    pad = 0
    if width is None:
        # Rare fallback (element count not a multiple of 128): pad the flats.
        width = _WIDTHS[0]
        n_pad = -(-n // width) * width
        pad = n_pad - n
        out_flat = jnp.pad(out_flat, (0, pad))
        tgt_flat = jnp.pad(tgt_flat, (0, pad))

    rows = (n + pad) // width
    out2d = out_flat.reshape(rows, width)
    tgt2d = tgt_flat.reshape(rows, width)

    # Block of ~512K elements; row cap is always a multiple of 8.
    row_cap = max(8, _BLOCK_ELEMS // width)
    block_rows = rows if rows <= row_cap else row_cap
    # Ragged last block (rows % block_rows != 0) is handled by Pallas:
    # OOB reads are unused garbage, OOB writes are masked off.
    grid = (pl.cdiv(rows, block_rows),)

    spec = pl.BlockSpec((block_rows, width), lambda i: (i, 0))
    kernel = functools.partial(
        _focal_kernel, alpha=float(alpha), gamma=float(gamma), smooth=float(smooth))

    loss2d = pl.pallas_call(
        kernel,
        out_shape=jax.ShapeDtypeStruct((rows, width), jnp.float32),
        grid_spec=pltpu.PrefetchScalarGridSpec(
            num_scalar_prefetch=0,
            grid=grid,
            in_specs=[spec, spec],
            out_specs=spec,
        ),
        compiler_params=pltpu.CompilerParams(
            dimension_semantics=("parallel",),      # shards across v7x's 2 TCs
            vmem_limit_bytes=_VMEM_LIMIT,           # v5e default (16 MiB) is too low
        ),
    )(out2d, tgt2d)

    if pad:
        loss = loss2d.reshape(-1)[:n]
    else:
        loss = loss2d
    loss = loss.reshape(orig_shape)
    return loss.astype(jnp.promote_types(orig_dtype, jnp.float32))


def _reference(output, target, alpha=ALPHA, gamma=GAMMA, smooth=SMOOTH):
    prob = jax.nn.sigmoid(output.astype(jnp.float32))
    prob = jnp.clip(prob, smooth, 1.0 - smooth)
    t = target.astype(jnp.float32)
    return (
        -t * (1.0 - alpha) * (1.0 - prob) ** gamma * jnp.log(prob)
        - (1.0 - t) * alpha * prob ** gamma * jnp.log(1.0 - prob)
    )


def _check(x, y, atol=1e-5, rtol=1e-5):
    loss = jax.block_until_ready(binary_focal_loss(x, y))
    ref = _reference(x, y)
    assert loss.shape == x.shape
    assert bool(jnp.all(jnp.isfinite(loss)))
    assert jnp.allclose(loss, ref, atol=atol, rtol=rtol), "mismatch vs reference"


if __name__ == "__main__":
    key = jax.random.PRNGKey(0)
    k1, k2, k3, k4, k5, k6 = jax.random.split(key, 6)

    # Primary case: NCHW segmentation logits, like the PyTorch module.
    x = jax.random.normal(k1, (2, 4, 16, 16), dtype=jnp.float32)
    y = (jax.random.uniform(k2, (2, 4, 16, 16)) > 0.5).astype(jnp.float32)
    _check(x, y)

    # Element count not a multiple of 128 -> padded-fallback path.
    x2 = jax.random.normal(k3, (3, 5, 7), dtype=jnp.float32)
    y2 = (jax.random.uniform(k4, (3, 5, 7)) > 0.5).astype(jnp.float32)
    _check(x2, y2)

    # Multi-block grid with a ragged last block (600 rows, block of 512).
    x3 = jax.random.normal(k5, (600, 1024), dtype=jnp.float32)
    y3 = (jax.random.uniform(k6, (600, 1024)) > 0.5).astype(jnp.float32)
    _check(x3, y3)

    print("KERNEL_OK")
</pallas_src>

<mosaic_0001>
module attributes {stable_mosaic.version = 11 : i64} {
  func.func @_focal_kernel(%arg0: i32, %arg1: memref<2x1024xf32, #tpu.memory_space<vmem>>, %arg2: memref<2x1024xf32, #tpu.memory_space<vmem>>, %arg3: memref<2x1024xf32, #tpu.memory_space<vmem>>) attributes {dimension_semantics = [#tpu.dimension_semantics<parallel>], iteration_bounds = array<i64: 1>, scalar_prefetch = 0 : i64, scratch_operands = 0 : i64, tpu.core_type = #tpu.core_type<tc>, window_params = [{transform_indices = @transform_0, window_bounds = array<i64: 2, 1024>}, {transform_indices = @transform_1, window_bounds = array<i64: 2, 1024>}, {transform_indices = @transform_2, window_bounds = array<i64: 2, 1024>}]} {
    %c0 = arith.constant 0 : index
    %c0_0 = arith.constant 0 : index
    %0 = vector.load %arg1[%c0, %c0_0] : memref<2x1024xf32, #tpu.memory_space<vmem>>, vector<2x1024xf32>
    %c0_1 = arith.constant 0 : index
    %c0_2 = arith.constant 0 : index
    %1 = vector.load %arg2[%c0_1, %c0_2] : memref<2x1024xf32, #tpu.memory_space<vmem>>, vector<2x1024xf32>
    %2 = math.absf %0 : vector<2x1024xf32>
    %cst = arith.constant 0.000000e+00 : f32
    %3 = vector.broadcast %cst : f32 to vector<2x1024xf32>
    %4 = arith.subf %3, %2 : vector<2x1024xf32>
    %5 = math.exp %4 : vector<2x1024xf32>
    %cst_3 = arith.constant 1.000000e+00 : f32
    %6 = vector.broadcast %cst_3 : f32 to vector<2x1024xf32>
    %7 = arith.addf %6, %5 : vector<2x1024xf32>
    %cst_4 = arith.constant 1.000000e+00 : f32
    %8 = vector.broadcast %cst_4 : f32 to vector<2x1024xf32>
    %9 = arith.divf %8, %7 : vector<2x1024xf32>
    %cst_5 = arith.constant 0.000000e+00 : f32
    %10 = vector.broadcast %cst_5 : f32 to vector<2x1024xf32>
    %11 = arith.cmpf oge, %0, %10 : vector<2x1024xf32>
    %12 = arith.mulf %5, %9 : vector<2x1024xf32>
    %13 = arith.select %11, %9, %12 : vector<2x1024xi1>, vector<2x1024xf32>
    %cst_6 = arith.constant 9.99999997E-7 : f32
    %cst_7 = arith.constant 0.999998986 : f32
    %14 = vector.broadcast %cst_6 : f32 to vector<2x1024xf32>
    %15 = arith.maximumf %14, %13 : vector<2x1024xf32>
    %16 = vector.broadcast %cst_7 : f32 to vector<2x1024xf32>
    %17 = arith.minimumf %16, %15 : vector<2x1024xf32>
    %cst_8 = arith.constant 1.000000e+00 : f32
    %18 = vector.broadcast %cst_8 : f32 to vector<2x1024xf32>
    %19 = arith.addf %18, %5 : vector<2x1024xf32>
    %20 = math.log %19 : vector<2x1024xf32>
    %cst_9 = arith.constant 0.000000e+00 : f32
    %21 = vector.broadcast %cst_9 : f32 to vector<2x1024xf32>
    %22 = arith.minimumf %0, %21 : vector<2x1024xf32>
    %23 = arith.subf %22, %20 : vector<2x1024xf32>
    %cst_10 = arith.constant -13.8155107 : f32
    %cst_11 = arith.constant -1.00000045E-6 : f32
    %24 = vector.broadcast %cst_10 : f32 to vector<2x1024xf32>
    %25 = arith.maximumf %24, %23 : vector<2x1024xf32>
    %26 = vector.broadcast %cst_11 : f32 to vector<2x1024xf32>
    %27 = arith.minimumf %26, %25 : vector<2x1024xf32>
    %cst_12 = arith.constant 0.000000e+00 : f32
    %28 = vector.broadcast %cst_12 : f32 to vector<2x1024xf32>
    %29 = arith.maximumf %0, %28 : vector<2x1024xf32>
    %cst_13 = arith.constant 0.000000e+00 : f32
    %30 = vector.broadcast %cst_13 : f32 to vector<2x1024xf32>
    %31 = arith.subf %30, %29 : vector<2x1024xf32>
    %32 = arith.subf %31, %20 : vector<2x1024xf32>
    %cst_14 = arith.constant -13.8155107 : f32
    %cst_15 = arith.constant -1.00000045E-6 : f32
    %33 = vector.broadcast %cst_14 : f32 to vector<2x1024xf32>
    %34 = arith.maximumf %33, %32 : vector<2x1024xf32>
    %35 = vector.broadcast %cst_15 : f32 to vector<2x1024xf32>
    %36 = arith.minimumf %35, %34 : vector<2x1024xf32>
    %cst_16 = arith.constant 1.000000e+00 : f32
    %37 = vector.broadcast %cst_16 : f32 to vector<2x1024xf32>
    %38 = arith.subf %37, %17 : vector<2x1024xf32>
    %39 = arith.mulf %38, %38 : vector<2x1024xf32>
    %40 = arith.mulf %17, %17 : vector<2x1024xf32>
    %cst_17 = arith.constant 0.000000e+00 : f32
    %41 = vector.broadcast %cst_17 : f32 to vector<2x1024xf32>
    %42 = arith.subf %41, %1 : vector<2x1024xf32>
    %cst_18 = arith.constant 7.500000e-01 : f32
    %43 = vector.broadcast %cst_18 : f32 to vector<2x1024xf32>
    %44 = arith.mulf %42, %43 : vector<2x1024xf32>
    %45 = arith.mulf %44, %39 : vector<2x1024xf32>
    %46 = arith.mulf %45, %27 : vector<2x1024xf32>
    %cst_19 = arith.constant 1.000000e+00 : f32
    %47 = vector.broadcast %cst_19 : f32 to vector<2x1024xf32>
    %48 = arith.subf %47, %1 : vector<2x1024xf32>
    %cst_20 = arith.constant 2.500000e-01 : f32
    %49 = vector.broadcast %cst_20 : f32 to vector<2x1024xf32>
    %50 = arith.mulf %48, %49 : vector<2x1024xf32>
    %51 = arith.mulf %50, %40 : vector<2x1024xf32>
    %52 = arith.mulf %51, %36 : vector<2x1024xf32>
    %53 = arith.subf %46, %52 : vector<2x1024xf32>
    %c0_21 = arith.constant 0 : index
    %c0_22 = arith.constant 0 : index
    %54 = vector.load %arg3[%c0_21, %c0_22] : memref<2x1024xf32, #tpu.memory_space<vmem>>, vector<2x1024xf32>
    tpu.vector_store %arg3[%c0_21, %c0_22], %53 {strides = array<i32>} : memref<2x1024xf32, #tpu.memory_space<vmem>>, vector<2x1024xf32>,
    return
  }
  func.func @transform_0(%arg0: i32) -> (i32, i32) {
    %c0_i32 = arith.constant 0 : i32
    %c0_i32_0 = arith.constant 0 : i32
    return %arg0, %c0_i32 : i32, i32
  }
  func.func @transform_1(%arg0: i32) -> (i32, i32) {
    %c0_i32 = arith.constant 0 : i32
    %c0_i32_0 = arith.constant 0 : i32
    return %arg0, %c0_i32 : i32, i32
  }
  func.func @transform_2(%arg0: i32) -> (i32, i32) {
    %c0_i32 = arith.constant 0 : i32
    %c0_i32_0 = arith.constant 0 : i32
    return %arg0, %c0_i32 : i32, i32
  }
}

</mosaic_0001>

<llo_original>
// kernel: tpu_custom_call.1
$region0: #{tpu_custom_call.1}
  #allocation0 [shape = 'u32[]', space=smem, size = 0x4, offset = 0x4, fixed_abs, tag = 'smem constant byte address 0x4 - core index']
  #allocation1 [shape = 'u32[144,128]{1,0:T(1,128)}', space=vmem, size = 0x12000, scoped, tag = 'internal scratch']
  %s0 = inlined_call_operand.hbm [shape: f32[2,1024], index: 0, kind: input, shape index: {}]
  %s1 = inlined_call_operand.hbm [shape: f32[2,1024], index: 1, kind: input, shape index: {}]
  %s2 = inlined_call_operand.hbm [shape: f32[2,1024], index: 2, kind: output, shape index: {}]
  %s3 = sld [smem:[#allocation0]]
  $region26: #{tpu_custom_call.1} parent=0
    _
  %s5 = ssub.s32 1, %s3
  %s6 = scalar_select 0, %s5, %s3
  $region1: #{tpu_custom_call.1} parent=0
    #allocation2 [shape = 'u8[8192]{0}', space=vmem, size = 0x2000, scoped, tag = 'input window, operand 0, single buffered']
    #allocation3 [shape = 's32[1]{0}', space=sflag, size = 0x4, scoped, tag = 'scoped memory for tpu_custom_call.1']
    #allocation4 [shape = 's32[1]{0}', space=sflag, size = 0x4, scoped, tag = 'scoped memory for tpu_custom_call.1']
    #allocation5 [shape = 'u8[8192]{0}', space=vmem, size = 0x2000, scoped, tag = 'input window, operand 1, single buffered']
    #allocation6 [shape = 's32[1]{0}', space=sflag, size = 0x4, scoped, tag = 'scoped memory for tpu_custom_call.1']
    #allocation7 [shape = 'u8[8192]{0}', space=vmem, size = 0x2000, scoped, tag = 'output window, operand 0, single buffered']
    %7 = vsyncpa [#allocation3], 0
    %8 = vsyncpa [#allocation6], 0
    %9 = vsyncpa [#allocation4], 0
    // Predicated region
    $region2: #{tpu_custom_call.1} parent=1 // pred_check
      _
    $region3: #{tpu_custom_call.1} parent=1 // pred_check_branch
      %11 = sbr.rel (0) target = $region5
    $region4: #{tpu_custom_call.1} parent=1 // pred_region
      %s13 = ssub.s32 256, 256
      %14 = vsyncadd [#allocation3], %s13
      %s16 = sshll.u32 [#allocation2], 4
      %s17 = int_to_ptr.vmem [resolvable:$true] %s16
      %19 = dma.hbm_to_vmem [thread:$0]  %s0, 256, %s17, [#allocation3]
    $region5: #{tpu_custom_call.1} parent=1 // pred_fallthru
      _
    // Predicated region
    $region6: #{tpu_custom_call.1} parent=1 // pred_check
      _
    $region7: #{tpu_custom_call.1} parent=1 // pred_check_branch
      %21 = sbr.rel (0) target = $region9
    $region8: #{tpu_custom_call.1} parent=1 // pred_region
      %s23 = ssub.s32 256, 256
      %24 = vsyncadd [#allocation6], %s23
      %s26 = sshll.u32 [#allocation5], 4
      %s27 = int_to_ptr.vmem [resolvable:$true] %s26
      %29 = dma.hbm_to_vmem [thread:$0]  %s1, 256, %s27, [#allocation6]
    $region9: #{tpu_custom_call.1} parent=1 // pred_fallthru
      _
    // Predicated region
    $region10: #{tpu_custom_call.1} parent=1 // pred_check
      _
    $region11: #{tpu_custom_call.1} parent=1 // pred_check_branch
      %31 = sbr.rel (0) target = $region13
    $region12: #{tpu_custom_call.1} parent=1 // pred_region
      %32 = dma.done [#allocation3], 256
    $region13: #{tpu_custom_call.1} parent=1 // pred_fallthru
      _
    // Predicated region
    $region14: #{tpu_custom_call.1} parent=1 // pred_check
      _
    $region15: #{tpu_custom_call.1} parent=1 // pred_check_branch
      %34 = sbr.rel (0) target = $region17
    $region16: #{tpu_custom_call.1} parent=1 // pred_region
      %35 = dma.done [#allocation6], 256
    $region17: #{tpu_custom_call.1} parent=1 // pred_fallthru
      _
    %v36 = vld [vmem:[#allocation2] sm:$0xff]
    %v37 = vld [vmem:[#allocation2 + $0x8] sm:$0xff]
    %v38 = vld [vmem:[#allocation5] sm:$0xff]
    %v39 = vld [vmem:[#allocation5 + $0x8] sm:$0xff]
    %v40 = vand.u32 2147483647, %v36
    %v41 = vand.u32 2147483647, %v37
    %v42 = vsub.f32 0.0, %v40
    %v43 = vsub.f32 0.0, %v41
    %v44 = vmul.f32 %v42, 1.442695
    %v45 = vpow.pop %v44
    %v46 = vmul.f32 %v43, 1.442695
    %v47 = vpow.pop %v46
    %v48 = vadd.f32 %v45, 1.0
    %v49 = vadd.f32 %v47, 1.0
    %v50 = vrcp.pop %v48
    %v51 = vmul.f32 1.0, %v50
    %v52 = vrcp.pop %v49
    %v53 = vmul.f32 1.0, %v52
    %vm54 = vcmp.ge.f32.partialorder %v36, 0.0
    %vm55 = vcmp.ge.f32.partialorder %v37, 0.0
    %v56 = vmul.f32 %v45, %v51
    %v57 = vmul.f32 %v47, %v53
    %v58 = vsel %vm54, %v51, %v56
    %v59 = vsel %vm55, %v53, %v57
    %v60 = vmax.f32 %v58, 1e-06
    %v61 = vmax.f32 %v59, 1e-06
    %v62 = vmin.f32 %v60, 0.999999
    %v63 = vmin.f32 %v61, 0.999999
    %v64 = vlog2.pop %v48
    %v65 = vmul.f32 %v64, 0.6931472
    %v66 = vlog2.pop %v49
    %v67 = vmul.f32 %v66, 0.6931472
    %v68 = vmin.f32 %v36, 0.0
    %v69 = vmin.f32 %v37, 0.0
    %v70 = vsub.f32 %v68, %v65
    %v71 = vsub.f32 %v69, %v67
    %v72 = vmax.f32 %v70, -13.815511
    %v73 = vmax.f32 %v71, -13.815511
    %v74 = vmin.f32 %v72, -1.0000005e-06
    %v75 = vmin.f32 %v73, -1.0000005e-06
    %v76 = vmax.f32 %v36, 0.0
    %v77 = vmax.f32 %v37, 0.0
    %v78 = vsub.f32 0.0, %v76
    %v79 = vsub.f32 0.0, %v77
    %v80 = vsub.f32 %v78, %v65
    %v81 = vsub.f32 %v79, %v67
    %v82 = vmax.f32 %v80, -13.815511
    %v83 = vmax.f32 %v81, -13.815511
    %v84 = vmin.f32 %v82, -1.0000005e-06
    %v85 = vmin.f32 %v83, -1.0000005e-06
    %v86 = vsub.f32 1.0, %v62
    %v87 = vsub.f32 1.0, %v63
    %v88 = vmul.f32 %v86, %v86
    %v89 = vmul.f32 %v87, %v87
    %v90 = vmul.f32 %v62, %v62
    %v91 = vmul.f32 %v63, %v63
    %v92 = vsub.f32 0.0, %v38
    %v93 = vsub.f32 0.0, %v39
    %v94 = vmul.f32 %v92, 0.75
    %v95 = vmul.f32 %v93, 0.75
    %v96 = vmul.f32 %v94, %v88
    %v97 = vmul.f32 %v95, %v89
    %v98 = vmul.f32 %v96, %v74
    %v99 = vmul.f32 %v97, %v75
    %v100 = vsub.f32 1.0, %v38
    %v101 = vsub.f32 1.0, %v39
    %v102 = vmul.f32 %v100, 0.25
    %v103 = vmul.f32 %v101, 0.25
    %v104 = vmul.f32 %v102, %v90
    %v105 = vmul.f32 %v103, %v91
    %v106 = vmul.f32 %v104, %v84
    %v107 = vmul.f32 %v105, %v85
    %v108 = vsub.f32 %v98, %v106
    %v109 = vsub.f32 %v99, %v107
    %110 = vst [vmem:[#allocation7] sm:$0xff] %v108
    %111 = vst [vmem:[#allocation7 + $0x8] sm:$0xff] %v109
    // Predicated region
    $region18: #{tpu_custom_call.1} parent=1 // pred_check
      _
    $region19: #{tpu_custom_call.1} parent=1 // pred_check_branch
      %113 = sbr.rel (0) target = $region21
    $region20: #{tpu_custom_call.1} parent=1 // pred_region
      %s115 = ssub.s32 256, 256
      %116 = vsyncadd [#allocation4], %s115
      %s118 = sshll.u32 [#allocation7], 4
      %s119 = int_to_ptr.vmem [resolvable:$true] %s118
      %121 = dma.vmem_to_hbm [thread:$0]  %s119, 256, %s2, [#allocation4]
    $region21: #{tpu_custom_call.1} parent=1 // pred_fallthru
      _
    // Predicated region
    $region22: #{tpu_custom_call.1} parent=1 // pred_check
      _
    $region23: #{tpu_custom_call.1} parent=1 // pred_check_branch
      %123 = sbr.rel (0) target = $region25
    $region24: #{tpu_custom_call.1} parent=1 // pred_region
      %124 = dma.done [#allocation4], 256
    $region25: #{tpu_custom_call.1} parent=1 // pred_fallthru
      _
    %125 = vsyncpa [#allocation3], 1
    %126 = vsyncpa [#allocation6], 1
    %127 = vsyncpa [#allocation4], 1

</llo_original>
